<compile_context>
chip_gen: v5e
topology: v5e:2x2
jax: 0.10.0
libtpu: 0.0.40
codegen_flags: <defaults>
</compile_context>

<pallas_src>
import functools

import jax
import jax.numpy as jnp
from jax.experimental import pallas as pl
from jax.experimental.pallas import tpu as pltpu


def _round_up(x, m):
    return (x + m - 1) // m * m


def two_layer_fc_kernel(x_ref, w1_ref, b1_ref, w2_ref, b2_ref, o_ref):
    """Fused forward for one batch tile: relu(relu(x @ W1 + b1) @ W2 + b2).

    Matmul operands are bf16; accumulation, bias-add and ReLU run in f32
    (keeps the elementwise path in f32 on v5e, which has no bf16 VPU).
    The final store casts to the bf16 output dtype.
    """
    h = jnp.dot(x_ref[...], w1_ref[...], preferred_element_type=jnp.float32)
    h = jnp.maximum(h + b1_ref[...], 0.0)                       # f32 (tb, H1p)
    y = jnp.dot(h.astype(jnp.bfloat16), w2_ref[...],
                preferred_element_type=jnp.float32)
    o_ref[...] = jnp.maximum(y + b2_ref[...], 0.0).astype(o_ref.dtype)


def prepare_params(w1, b1, w2, b2):
    """One-time preprocessing (call at init, NOT per forward).

    w1: [state_dim, hidden], b1: [hidden] or [1, hidden]
    w2: [hidden, out],       b2: [out]    or [1, out]

    Hidden (contraction) dim is padded only to a multiple of 16 (bf16 sublane
    packing); the output dim is padded to a multiple of 128 for lane-dense
    (unmasked) stores.  Padded hidden units get zero bias and zero w2 rows,
    so they contribute nothing to the real outputs.
    """
    K, H1 = w1.shape
    H1w, H2 = w2.shape
    assert H1w == H1, "fc2 in_features must equal fc1 out_features"
    H1p = _round_up(H1, 16)
    H2p = _round_up(H2, 128)
    w1_p = jnp.pad(w1, ((0, 0), (0, H1p - H1))).astype(jnp.bfloat16)
    b1_p = jnp.pad(b1.reshape(1, -1), ((0, 0), (0, H1p - H1))).astype(jnp.float32)
    w2_p = jnp.pad(w2, ((0, H1p - H1), (0, H2p - H2))).astype(jnp.bfloat16)
    b2_p = jnp.pad(b2.reshape(1, -1), ((0, 0), (0, H2p - H2))).astype(jnp.float32)
    return (w1_p, b1_p, w2_p, b2_p), H2


@functools.partial(jax.jit,
                   static_argnames=("out_features", "block_b", "out_dtype"))
def two_layer_fc_forward(x, w1_p, b1_p, w2_p, b2_p, *, out_features,
                         block_b=512, out_dtype=jnp.bfloat16):
    """x: [B, state_dim]; (w1_p, b1_p, w2_p, b2_p) from prepare_params()."""
    B, K = x.shape
    H1p = w1_p.shape[1]
    H2p = w2_p.shape[1]

    # Batch tile: multiple of 16 (bf16 sublane packing), capped at block_b, and
    # chosen so the grid has >=2 tiles whenever B allows -> both v7x TCs busy.
    tb = min(block_b, max(16, _round_up(pl.cdiv(B, 2), 16)))
    B_pad = _round_up(B, tb)
    num_tiles = B_pad // tb

    x_p = jnp.pad(x, ((0, B_pad - B), (0, 0))).astype(jnp.bfloat16)

    resident = pl.Buffered(1)   # weights/biases never change across batch tiles
    out_isz = jnp.dtype(out_dtype).itemsize

    # VMEM budget: single-buffered weights/biases + double-buffered x/out tiles
    # + f32 intermediates, with 2x headroom; clamp to [16 MiB, 64 MiB (v7x cap)].
    weight_bytes = (K * H1p + H1p * H2p) * 2 + (H1p + H2p) * 4
    tile_bytes = 2 * (tb * K * 2 + tb * H2p * out_isz) + tb * (H1p + H2p) * 4
    vmem_limit = int(min(64 * 2**20,
                         max(16 * 2**20, 2 * (weight_bytes + tile_bytes))))
    # TODO(synk): for very large hidden sizes (bf16 w2 approaching ~32 MiB, i.e.
    # no longer VMEM-resident on v7x), add a second grid axis tiling w2/b2/output
    # columns with the layer-1 activation kept in a persistent VMEM scratch.

    cost = pl.CostEstimate(
        flops=2 * B_pad * (K * H1p + H1p * H2p),
        transcendentals=0,
        bytes_accessed=B_pad * K * 2 + weight_bytes + B_pad * H2p * out_isz)

    out = pl.pallas_call(
        two_layer_fc_kernel,
        out_shape=jax.ShapeDtypeStruct((B_pad, H2p), out_dtype),
        grid_spec=pl.GridSpec(
            grid=(num_tiles,),
            in_specs=[
                pl.BlockSpec((tb, K), lambda i: (i, 0)),          # batch tile of x
                pl.BlockSpec((K, H1p), lambda i: (0, 0), pipeline_mode=resident),
                pl.BlockSpec((1, H1p), lambda i: (0, 0), pipeline_mode=resident),
                pl.BlockSpec((H1p, H2p), lambda i: (0, 0), pipeline_mode=resident),
                pl.BlockSpec((1, H2p), lambda i: (0, 0), pipeline_mode=resident),
            ],
            out_specs=pl.BlockSpec((tb, H2p), lambda i: (i, 0)),
        ),
        compiler_params=pltpu.CompilerParams(
            dimension_semantics=("parallel",),   # batch tiles are independent
            vmem_limit_bytes=vmem_limit),
        cost_estimate=cost,
    )(x_p, w1_p, b1_p, w2_p, b2_p)

    return out[:B, :out_features]


def init_linear_params(key, in_features, out_features):
    """Deterministic init matching torch.nn.Linear default:
    U(-1/sqrt(fan_in), 1/sqrt(fan_in)) for both weight and bias.
    Weight is returned transposed: [in_features, out_features]."""
    kw, kb = jax.random.split(key)
    bound = 1.0 / jnp.sqrt(jnp.float32(in_features))
    w = jax.random.uniform(kw, (in_features, out_features), jnp.float32,
                           minval=-bound, maxval=bound)
    b = jax.random.uniform(kb, (1, out_features), jnp.float32,
                           minval=-bound, maxval=bound)
    return w, b


if __name__ == "__main__":
    batch = 8
    state_dim = 16
    hidden_size = 64

    root = jax.random.PRNGKey(0)
    k_x, k_fc1, k_fc2 = jax.random.split(root, 3)

    x = jax.random.normal(k_x, (batch, state_dim), jnp.float32)
    w1, b1 = init_linear_params(k_fc1, state_dim, hidden_size)
    w2, b2 = init_linear_params(k_fc2, hidden_size, hidden_size)

    # One-time (init-time) padding / bf16 casting of the parameters.
    (w1_p, b1_p, w2_p, b2_p), out_features = prepare_params(w1, b1, w2, b2)
    (w1_p, b1_p, w2_p, b2_p) = jax.block_until_ready((w1_p, b1_p, w2_p, b2_p))

    out = two_layer_fc_forward(x, w1_p, b1_p, w2_p, b2_p,
                               out_features=out_features)
    out = jax.block_until_ready(out)

    # Pure-JAX f32 reference of TwoLayerFCNet.forward (gate=relu on both layers).
    # Kernel uses bf16 matmul operands / bf16 output with f32 accumulation, so
    # compare with a bf16-level tolerance.
    ref = jnp.maximum(jnp.maximum(x @ w1 + b1, 0.0) @ w2 + b2, 0.0)
    assert out.shape == (batch, hidden_size)
    assert out.dtype == jnp.bfloat16
    out_f32 = out.astype(jnp.float32)
    assert jnp.allclose(out_f32, ref, atol=5e-2, rtol=5e-2), float(
        jnp.max(jnp.abs(out_f32 - ref)))

    print("KERNEL_OK")
</pallas_src>

<mosaic_0001>
module attributes {stable_mosaic.version = 11 : i64} {
  func.func @two_layer_fc_kernel(%arg0: i32, %arg1: memref<16x16xbf16, #tpu.memory_space<vmem>>, %arg2: memref<16x64xbf16, #tpu.memory_space<vmem>>, %arg3: memref<1x64xf32, #tpu.memory_space<vmem>>, %arg4: memref<64x128xbf16, #tpu.memory_space<vmem>>, %arg5: memref<1x128xf32, #tpu.memory_space<vmem>>, %arg6: memref<16x128xbf16, #tpu.memory_space<vmem>>) attributes {dimension_semantics = [#tpu.dimension_semantics<parallel>], iteration_bounds = array<i64: 1>, scalar_prefetch = 0 : i64, scratch_operands = 0 : i64, tpu.core_type = #tpu.core_type<tc>, window_params = [{transform_indices = @transform_0, window_bounds = array<i64: 16, 16>}, {pipeline_mode = #tpu.pipeline_mode<synchronous>, transform_indices = @transform_1, window_bounds = array<i64: 16, 64>}, {pipeline_mode = #tpu.pipeline_mode<synchronous>, transform_indices = @transform_2, window_bounds = array<i64: 1, 64>}, {pipeline_mode = #tpu.pipeline_mode<synchronous>, transform_indices = @transform_3, window_bounds = array<i64: 64, 128>}, {pipeline_mode = #tpu.pipeline_mode<synchronous>, transform_indices = @transform_4, window_bounds = array<i64: 1, 128>}, {transform_indices = @transform_5, window_bounds = array<i64: 16, 128>}]} {
    %c0 = arith.constant 0 : index
    %c0_0 = arith.constant 0 : index
    %0 = vector.load %arg1[%c0, %c0_0] : memref<16x16xbf16, #tpu.memory_space<vmem>>, vector<16x16xbf16>
    %c0_1 = arith.constant 0 : index
    %c0_2 = arith.constant 0 : index
    %1 = vector.load %arg2[%c0_1, %c0_2] : memref<16x64xbf16, #tpu.memory_space<vmem>>, vector<16x64xbf16>
    %cst = arith.constant dense<0.000000e+00> : vector<16x64xf32>
    %2 = tpu.matmul %0, %1, %cst {dimension_numbers = #tpu.dot_dimension_numbers<[1], [0], [0], [1], [0, 0, 1, 1], [], []>} : vector<16x16xbf16>, vector<16x64xbf16>, vector<16x64xf32> -> vector<16x64xf32>
    %c0_3 = arith.constant 0 : index
    %c0_4 = arith.constant 0 : index
    %3 = vector.load %arg3[%c0_3, %c0_4] : memref<1x64xf32, #tpu.memory_space<vmem>>, vector<1x64xf32>
    %4 = vector.broadcast %3 : vector<1x64xf32> to vector<16x64xf32>
    %5 = arith.addf %2, %4 : vector<16x64xf32>
    %cst_5 = arith.constant 0.000000e+00 : f32
    %6 = vector.broadcast %cst_5 : f32 to vector<16x64xf32>
    %7 = arith.maximumf %5, %6 : vector<16x64xf32>
    %8 = arith.truncf %7 : vector<16x64xf32> to vector<16x64xbf16>
    %c0_6 = arith.constant 0 : index
    %c0_7 = arith.constant 0 : index
    %9 = vector.load %arg4[%c0_6, %c0_7] : memref<64x128xbf16, #tpu.memory_space<vmem>>, vector<64x128xbf16>
    %cst_8 = arith.constant dense<0.000000e+00> : vector<16x128xf32>
    %10 = tpu.matmul %8, %9, %cst_8 {dimension_numbers = #tpu.dot_dimension_numbers<[1], [0], [0], [1], [0, 0, 1, 1], [], []>} : vector<16x64xbf16>, vector<64x128xbf16>, vector<16x128xf32> -> vector<16x128xf32>
    %c0_9 = arith.constant 0 : index
    %c0_10 = arith.constant 0 : index
    %11 = vector.load %arg5[%c0_9, %c0_10] : memref<1x128xf32, #tpu.memory_space<vmem>>, vector<1x128xf32>
    %12 = vector.broadcast %11 : vector<1x128xf32> to vector<16x128xf32>
    %13 = arith.addf %10, %12 : vector<16x128xf32>
    %cst_11 = arith.constant 0.000000e+00 : f32
    %14 = vector.broadcast %cst_11 : f32 to vector<16x128xf32>
    %15 = arith.maximumf %13, %14 : vector<16x128xf32>
    %16 = arith.truncf %15 : vector<16x128xf32> to vector<16x128xbf16>
    %c0_12 = arith.constant 0 : index
    %c0_13 = arith.constant 0 : index
    %17 = vector.load %arg6[%c0_12, %c0_13] : memref<16x128xbf16, #tpu.memory_space<vmem>>, vector<16x128xbf16>
    tpu.vector_store %arg6[%c0_12, %c0_13], %16 {strides = array<i32>} : memref<16x128xbf16, #tpu.memory_space<vmem>>, vector<16x128xbf16>,
    return
  }
  func.func @transform_0(%arg0: i32) -> (i32, i32) {
    %c0_i32 = arith.constant 0 : i32
    %c0_i32_0 = arith.constant 0 : i32
    return %arg0, %c0_i32 : i32, i32
  }
  func.func @transform_1(%arg0: i32) -> (i32, i32) {
    %c0_i32 = arith.constant 0 : i32
    %c0_i32_0 = arith.constant 0 : i32
    %c0_i32_1 = arith.constant 0 : i32
    return %c0_i32, %c0_i32_0 : i32, i32
  }
  func.func @transform_2(%arg0: i32) -> (i32, i32) {
    %c0_i32 = arith.constant 0 : i32
    %c0_i32_0 = arith.constant 0 : i32
    %c0_i32_1 = arith.constant 0 : i32
    return %c0_i32, %c0_i32_0 : i32, i32
  }
  func.func @transform_3(%arg0: i32) -> (i32, i32) {
    %c0_i32 = arith.constant 0 : i32
    %c0_i32_0 = arith.constant 0 : i32
    %c0_i32_1 = arith.constant 0 : i32
    return %c0_i32, %c0_i32_0 : i32, i32
  }
  func.func @transform_4(%arg0: i32) -> (i32, i32) {
    %c0_i32 = arith.constant 0 : i32
    %c0_i32_0 = arith.constant 0 : i32
    %c0_i32_1 = arith.constant 0 : i32
    return %c0_i32, %c0_i32_0 : i32, i32
  }
  func.func @transform_5(%arg0: i32) -> (i32, i32) {
    %c0_i32 = arith.constant 0 : i32
    %c0_i32_0 = arith.constant 0 : i32
    return %arg0, %c0_i32 : i32, i32
  }
}

</mosaic_0001>

<llo_original>
// kernel: two_layer_fc_forward.1
$region0: #{two_layer_fc_forward.1}
  #allocation0 [shape = 'u32[]', space=smem, size = 0x4, offset = 0x4, fixed_abs, tag = 'smem constant byte address 0x4 - core index']
  #allocation1 [shape = 'u32[72,128]{1,0:T(1,128)}', space=vmem, size = 0x9000, scoped, tag = 'internal scratch']
  %s0 = inlined_call_operand.vmem [shape: bf16[16,16], index: 0, kind: input, shape index: {}]
  %s1 = inlined_call_operand.vmem [shape: bf16[16,64], index: 1, kind: input, shape index: {}]
  %s2 = inlined_call_operand.vmem [shape: f32[1,64], index: 2, kind: input, shape index: {}]
  %s3 = inlined_call_operand.hbm [shape: bf16[64,128], index: 3, kind: input, shape index: {}]
  %s4 = inlined_call_operand.vmem [shape: f32[1,128], index: 4, kind: input, shape index: {}]
  %s5 = inlined_call_operand.vmem [shape: bf16[16,128], index: 5, kind: output, shape index: {}]
  %s6 = sld [smem:[#allocation0]]
  $region34: #{two_layer_fc_forward.1} parent=0
    _
  %s8 = ssub.s32 1, %s6
  %s9 = scalar_select 0, %s8, %s6
  $region1: #{two_layer_fc_forward.1} parent=0
    #allocation2 [shape = 'u8[16384]{0}', space=vmem, size = 0x4000, scoped, tag = 'input window, operand 3, single buffered']
    #allocation3 [shape = 's32[1]{0}', space=sflag, size = 0x4, scoped, tag = 'scoped memory for two_layer_fc_forward.1']
    %10 = vsyncpa [#allocation3], 0
    // Predicated region
    $region2: #{two_layer_fc_forward.1} parent=1 // pred_check
      _
    $region3: #{two_layer_fc_forward.1} parent=1 // pred_check_branch
      %12 = sbr.rel (0) target = $region5
    $region4: #{two_layer_fc_forward.1} parent=1 // pred_region
      _
    $region5: #{two_layer_fc_forward.1} parent=1 // pred_fallthru
      _
    // Predicated region
    $region6: #{two_layer_fc_forward.1} parent=1 // pred_check
      _
    $region7: #{two_layer_fc_forward.1} parent=1 // pred_check_branch
      %14 = sbr.rel (0) target = $region9
    $region8: #{two_layer_fc_forward.1} parent=1 // pred_region
      _
    $region9: #{two_layer_fc_forward.1} parent=1 // pred_fallthru
      _
    // Predicated region
    $region10: #{two_layer_fc_forward.1} parent=1 // pred_check
      _
    $region11: #{two_layer_fc_forward.1} parent=1 // pred_check_branch
      %16 = sbr.rel (0) target = $region13
    $region12: #{two_layer_fc_forward.1} parent=1 // pred_region
      _
    $region13: #{two_layer_fc_forward.1} parent=1 // pred_fallthru
      _
    // Predicated region
    $region14: #{two_layer_fc_forward.1} parent=1 // pred_check
      _
    $region15: #{two_layer_fc_forward.1} parent=1 // pred_check_branch
      %18 = sbr.rel (0) target = $region17
    $region16: #{two_layer_fc_forward.1} parent=1 // pred_region
      %20 = vsyncadd [#allocation3], 0
      %s21 = sshll.u32 %s3, 4
      %s22 = int_to_ptr.hbm [resolvable:$true] %s21
      %s23 = sshll.u32 [#allocation2], 4
      %s24 = int_to_ptr.vmem [resolvable:$true] %s23
      %29 = dma.hbm_to_vmem [thread:$0]  %s22, 512, %s24, [#allocation3], 64, 64, 4
    $region17: #{two_layer_fc_forward.1} parent=1 // pred_fallthru
      _
    // Predicated region
    $region18: #{two_layer_fc_forward.1} parent=1 // pred_check
      _
    $region19: #{two_layer_fc_forward.1} parent=1 // pred_check_branch
      %31 = sbr.rel (0) target = $region21
    $region20: #{two_layer_fc_forward.1} parent=1 // pred_region
      _
    $region21: #{two_layer_fc_forward.1} parent=1 // pred_fallthru
      _
    // Predicated region
    $region22: #{two_layer_fc_forward.1} parent=1 // pred_check
      _
    $region23: #{two_layer_fc_forward.1} parent=1 // pred_check_branch
      %33 = sbr.rel (0) target = $region25
    $region24: #{two_layer_fc_forward.1} parent=1 // pred_region
      %35 = dma.done [#allocation3], 512
    $region25: #{two_layer_fc_forward.1} parent=1 // pred_fallthru
      _
    %v37 = vld [vmem:[%s0] sm:$0xf]
    %v38 = vld [vmem:[%s0 + $0x4] sm:$0xf]
    %v39 = vld [vmem:[%s1] sm:$0xf]
    %v40 = vld [vmem:[%s1 + $0x4] sm:$0xf]
    %v41 = vld [vmem:[%s2] sm:$0x1]
    %v43 = vperm.slane %v41, 0
    %v47 = vunpack.c.l.b16 %v37
    %v48 = vunpack.c.l.b16 %v38
    %v49 = vpack.c.b16 %v48, %v47
    %v52 = vunpack.c.l.b16 %v39
    %v53 = vunpack.c.l.b16 %v40
    %v54 = vpack.c.b16 %v53, %v52
    %vm56 = vcmask 130048
    %v58 = vsel %vm56, %v49, 0
    %60 = vmatpush.bf16.msra.mxu0 0
    %61 = vmatpush.bf16.msra.mxu0 0
    %62 = vmatpush.bf16.msra.mxu0 0
    %63 = vmatpush.bf16.msra.mxu0 0
    %64 = vmatpush.bf16.msra.mxu0 0
    %65 = vmatpush.bf16.msra.mxu0 0
    %66 = vmatpush.bf16.msra.mxu0 0
    %67 = vmatpush.bf16.msra.mxu0 %v54
    %68 = vmatmul.bf16.gmra.mxu0 %v58
    %v69 = vpop.f32.mrf.mxu0
    %v70 = vadd.f32 %v43, %v69
    %v71 = vpop.f32.mrf.mxu0
    %v72 = vadd.f32 %v43, %v71
    %73 = vdwg.mxu0
    %v74 = vmax.f32 %v70, 0.0
    %v75 = vmax.f32 %v72, 0.0
    %v76 = vpack.c.bf16 %v75, %v74
    %v77 = vld [vmem:[#allocation2] sm:$0xf]
    %v78 = vld [vmem:[#allocation2 + $0x4] sm:$0xf]
    %v79 = vld [vmem:[#allocation2 + $0x8] sm:$0xf]
    %v80 = vld [vmem:[#allocation2 + $0xc] sm:$0xf]
    %v81 = vld [vmem:[#allocation2 + $0x10] sm:$0xf]
    %v82 = vld [vmem:[#allocation2 + $0x14] sm:$0xf]
    %v83 = vld [vmem:[#allocation2 + $0x18] sm:$0xf]
    %v84 = vld [vmem:[#allocation2 + $0x1c] sm:$0xf]
    %v85 = vld [vmem:[%s4] sm:$0x1]
    %v87 = vperm.slane %v85, 0
    %v97 = vunpack.c.l.b16 %v77
    %v98 = vunpack.c.l.b16 %v78
    %v99 = vunpack.c.l.b16 %v79
    %v100 = vunpack.c.l.b16 %v80
    %v101 = vunpack.c.l.b16 %v81
    %v102 = vunpack.c.l.b16 %v82
    %v103 = vunpack.c.l.b16 %v83
    %v104 = vunpack.c.l.b16 %v84
    %v105 = vpack.c.b16 %v98, %v97
    %v106 = vpack.c.b16 %v100, %v99
    %v107 = vpack.c.b16 %v102, %v101
    %v108 = vpack.c.b16 %v104, %v103
    %vm113 = vcmask 523264
    %v115 = vsel %vm113, %v76, 0
    %117 = vmatpush.bf16.msra.mxu0 0
    %118 = vmatpush.bf16.msra.mxu0 0
    %119 = vmatpush.bf16.msra.mxu0 0
    %120 = vmatpush.bf16.msra.mxu0 0
    %121 = vmatpush.bf16.msra.mxu0 %v108
    %122 = vmatpush.bf16.msra.mxu0 %v107
    %123 = vmatpush.bf16.msra.mxu0 %v106
    %124 = vmatpush.bf16.msra.mxu0 %v105
    %125 = vmatmul.bf16.gmra.mxu0 %v115
    %v126 = vpop.f32.mrf.mxu0
    %v127 = vadd.f32 %v87, %v126
    %v128 = vpop.f32.mrf.mxu0
    %v129 = vadd.f32 %v87, %v128
    %130 = vdwg.mxu0
    %v131 = vmax.f32 %v127, 0.0
    %v132 = vmax.f32 %v129, 0.0
    %v133 = vpack.c.bf16 %v131, %v131
    %v134 = vpack.c.bf16 %v132, %v132
    %135 = vst [vmem:[%s5] sm:$0xf] %v133
    %136 = vst [vmem:[%s5 + $0x4] sm:$0xf] %v134
    // Predicated region
    $region26: #{two_layer_fc_forward.1} parent=1 // pred_check
      _
    $region27: #{two_layer_fc_forward.1} parent=1 // pred_check_branch
      %138 = sbr.rel (0) target = $region29
    $region28: #{two_layer_fc_forward.1} parent=1 // pred_region
      _
    $region29: #{two_layer_fc_forward.1} parent=1 // pred_fallthru
      _
    // Predicated region
    $region30: #{two_layer_fc_forward.1} parent=1 // pred_check
      _
    $region31: #{two_layer_fc_forward.1} parent=1 // pred_check_branch
      %140 = sbr.rel (0) target = $region33
    $region32: #{two_layer_fc_forward.1} parent=1 // pred_region
      _
    $region33: #{two_layer_fc_forward.1} parent=1 // pred_fallthru
      _
    %141 = vsyncpa [#allocation3], 1

</llo_original>
